<compile_context>
chip_gen: v7x
topology: tpu7x:2x2x1
jax: 0.10.0
libtpu: 0.0.40
codegen_flags: <defaults>
</compile_context>

<pallas_src>
import math

import jax
import jax.numpy as jnp
from jax import lax
from jax.experimental import pallas as pl
from jax.experimental.pallas import tpu as pltpu

M_MARGIN = 4                  # self.m = 4 -> cos(4*theta) = 8c^4 - 8c^2 + 1
_PI_TORCH = 3.1415926         # constant used by the PyTorch module (not math.pi)
_MAXNORM = 1e-5
_MUL = 1e5
_SMALL_B = 1024               # single ungridded invocation at/below this batch size
_MAX_TILE_B = 4096            # tile cap (sized for v7x's 64 MiB physical VMEM)
_VMEM_LIMIT = 48 * 1024 * 1024

# theta >= j*pi/m  <=>  cos_theta <= cos(j*pi/m)  (cos decreasing on [0, pi]), so
# k = floor(m*theta/pi) is the count of satisfied thresholds (no acos needed).
_K_THRESHOLDS = tuple(
    float(math.cos(j * _PI_TORCH / M_MARGIN)) for j in range(1, M_MARGIN + 1)
)


def _round_up(n, m):
    return ((n + m - 1) // m) * m


def _angle_linear_kernel(x_ref, w_ref, xcos_ref, xphi_ref):
    """x_ref: (TB, 2) f32, w_ref: (2, cout) pre-renormed weight, outputs: (TB, cout)."""
    x = x_ref[...].astype(jnp.float32)     # (TB, Cin), Cin == 2
    ww = w_ref[...].astype(jnp.float32)    # (Cin, cout), already renormed in the wrapper
    cin = x.shape[1]

    x_cols = [x[:, c:c + 1] for c in range(cin)]    # Cin x (TB, 1)
    w_rows = [ww[c:c + 1, :] for c in range(cin)]   # Cin x (1, cout)

    # --- logits = x @ ww : K=2 contraction as VPU broadcast FMAs (skip the MXU) -------
    logits = x_cols[0] * w_rows[0]
    for c in range(1, cin):
        logits = logits + x_cols[c] * w_rows[c]     # (TB, cout)

    # --- per-row L2 norm: one EUP rsqrt; sqrt recovered as s * rsqrt(s) ---------------
    row_sq = x_cols[0] * x_cols[0]
    for xc in x_cols[1:]:
        row_sq = row_sq + xc * xc                   # (TB, 1)
    inv_norm = lax.rsqrt(row_sq)    # all-zero rows -> inf -> NaN, same as PyTorch's 0/0
    x_norm = row_sq * inv_norm      # == sqrt(row_sq) for row_sq > 0

    cos_theta = jnp.clip(logits * inv_norm, -1.0, 1.0)

    # --- cos(m*theta), m = 4 (Chebyshev) -----------------------------------------------
    c2 = cos_theta * cos_theta
    cos_m_theta = 8.0 * c2 * c2 - 8.0 * c2 + 1.0

    # --- k = floor(m*theta/pi) via threshold masks; (-1)^k from integer parity --------
    k_int = (cos_theta <= _K_THRESHOLDS[0]).astype(jnp.int32)
    for thr in _K_THRESHOLDS[1:]:
        k_int = k_int + (cos_theta <= thr).astype(jnp.int32)
    sign = (1 - 2 * (k_int & 1)).astype(jnp.float32)
    phi_theta = sign * cos_m_theta - 2.0 * k_int.astype(jnp.float32)

    # x_cos_theta = cos_theta * x_norm == clip(logits, -x_norm, x_norm)  (x_norm >= 0)
    xcos_ref[...] = jnp.clip(logits, -x_norm, x_norm)
    xphi_ref[...] = phi_theta * x_norm


def _vmem_spec():
    return pl.BlockSpec(memory_space=pltpu.MemorySpace.VMEM)


@jax.jit
def angle_linear(x, weight):
    """x: (B, 2) f32, weight: (2, 10) f32 -> (x_cos_theta, x_phi_theta), each (B, 10)."""
    x = x.astype(jnp.float32)
    weight = weight.astype(jnp.float32)
    B, cin = x.shape
    cout = weight.shape[1]
    assert weight.shape[0] == cin

    # Fold torch `w.renorm(2, 1, 1e-5).mul(1e5)` into the wrapper (tiny (2, cout) op),
    # so the gridded kernel does not recompute it on every grid step.
    col_norm = jnp.sqrt(jnp.sum(weight * weight, axis=0, keepdims=True))
    over = col_norm > _MAXNORM
    ww = weight * (jnp.where(over, _MAXNORM / jnp.where(over, col_norm, 1.0), 1.0) * _MUL)

    out_shape = (jax.ShapeDtypeStruct((B, cout), jnp.float32),
                 jax.ShapeDtypeStruct((B, cout), jnp.float32))

    if B <= _SMALL_B:
        # Small batch: single invocation, no grid, everything resident in VMEM.
        return pl.pallas_call(
            _angle_linear_kernel,
            out_shape=out_shape,
            in_specs=[_vmem_spec(), _vmem_spec()],
            out_specs=(_vmem_spec(), _vmem_spec()),
        )(x, ww)

    # Large batch: row-tiled over the UNPADDED arrays, dense (B, cout) outputs.
    # >=4 grid steps so the "parallel" batch axis feeds both TensorCores on v7x;
    # ragged last tile handled by Pallas edge-block clipping (OOB rows never written).
    tile_b = min(_MAX_TILE_B, _round_up(pl.cdiv(B, 4), 8))
    n_tiles = pl.cdiv(B, tile_b)
    return pl.pallas_call(
        _angle_linear_kernel,
        out_shape=out_shape,
        grid=(n_tiles,),
        in_specs=[
            pl.BlockSpec((tile_b, cin), lambda i: (i, 0)),
            pl.BlockSpec((cin, cout), lambda i: (0, 0)),   # resident across all steps
        ],
        out_specs=(
            pl.BlockSpec((tile_b, cout), lambda i: (i, 0)),
            pl.BlockSpec((tile_b, cout), lambda i: (i, 0)),
        ),
        compiler_params=pltpu.CompilerParams(
            dimension_semantics=("parallel",),   # 2 TCs on v7x; measured no-op on v5e/v6e
            vmem_limit_bytes=_VMEM_LIMIT,        # above v5e's 16 MiB default scoped limit
        ),
    )(x, ww)


def _angle_linear_ref(x, weight, m=M_MARGIN):
    """Pure-JAX reference matching the PyTorch forward."""
    x = jnp.asarray(x, jnp.float32)
    w = jnp.asarray(weight, jnp.float32)
    col_norm = jnp.sqrt(jnp.sum(w * w, axis=0, keepdims=True))
    over = col_norm > _MAXNORM
    ww = w * jnp.where(over, _MAXNORM / jnp.where(over, col_norm, 1.0), 1.0) * _MUL
    x_norm = jnp.sqrt(jnp.sum(x * x, axis=1, keepdims=True))
    cos_theta = jnp.clip((x @ ww) / x_norm, -1.0, 1.0)
    c2 = cos_theta * cos_theta
    cos_m_theta = 8.0 * c2 * c2 - 8.0 * c2 + 1.0
    theta = jnp.arccos(cos_theta)
    k = jnp.floor(m * theta / _PI_TORCH)
    sign = 1.0 - 2.0 * jnp.mod(k, 2.0)
    phi = sign * cos_m_theta - 2.0 * k
    return cos_theta * x_norm, phi * x_norm


if __name__ == "__main__":
    key = jax.random.PRNGKey(0)
    kx, kw, kx2 = jax.random.split(key, 3)

    # Input implied by the module: x.mm(ww) with ww (2, 10) -> x is (B, 2)
    B = 8
    x = jax.random.normal(kx, (B, 2), dtype=jnp.float32)

    # Deterministic parameter init mirroring __init__:
    #   xavier_uniform_ on a (2, 10) tensor, then renorm_(2, 1, 1e-5).mul_(1e5)
    bound = math.sqrt(6.0 / (2 + 10))
    w0 = jax.random.uniform(kw, (2, 10), dtype=jnp.float32, minval=-bound, maxval=bound)
    col_norm0 = jnp.sqrt(jnp.sum(w0 * w0, axis=0, keepdims=True))
    w = w0 * jnp.where(col_norm0 > _MAXNORM, _MAXNORM / col_norm0, 1.0) * _MUL

    # --- small-batch (no-grid) path ---------------------------------------------------
    x_cos_theta, x_phi_theta = angle_linear(x, w)
    jax.block_until_ready((x_cos_theta, x_phi_theta))
    ref_cos, ref_phi = _angle_linear_ref(x, w)
    assert x_cos_theta.shape == (B, 10) and x_phi_theta.shape == (B, 10)
    assert bool(jnp.all(jnp.isfinite(x_cos_theta))) and bool(jnp.all(jnp.isfinite(x_phi_theta)))
    assert bool(jnp.allclose(x_cos_theta, ref_cos, rtol=1e-3, atol=1e-3))
    assert bool(jnp.allclose(x_phi_theta, ref_phi, rtol=1e-3, atol=1e-3))

    # --- large-batch (tiled, unpadded, ragged-edge) path --------------------------------
    B2 = 3000  # > _SMALL_B and not a multiple of the tile -> exercises edge-block clipping
    x2 = jax.random.normal(kx2, (B2, 2), dtype=jnp.float32)
    xc2, xp2 = angle_linear(x2, w)
    jax.block_until_ready((xc2, xp2))
    rc2, rp2 = _angle_linear_ref(x2, w)
    assert xc2.shape == (B2, 10) and xp2.shape == (B2, 10)
    assert bool(jnp.all(jnp.isfinite(xc2))) and bool(jnp.all(jnp.isfinite(xp2)))
    assert bool(jnp.allclose(xc2, rc2, rtol=1e-3, atol=1e-3))
    # phi can legitimately differ by one sector (k off-by-one) for values landing within
    # float rounding of a sector boundary; require mismatches to be (essentially) absent.
    bad_frac = float(jnp.mean((jnp.abs(xp2 - rp2) > 1e-2 * (1.0 + jnp.abs(rp2))).astype(jnp.float32)))
    assert bad_frac < 1e-3

    print("KERNEL_OK")
</pallas_src>

<mosaic_0001>
module attributes {stable_mosaic.version = 11 : i64} {
  func.func @_angle_linear_kernel(%arg0: memref<8x2xf32, #tpu.memory_space<vmem>>, %arg1: memref<2x10xf32, #tpu.memory_space<vmem>>, %arg2: memref<8x10xf32, #tpu.memory_space<vmem>>, %arg3: memref<8x10xf32, #tpu.memory_space<vmem>>) attributes {dimension_semantics = [], scalar_prefetch = 0 : i64, scratch_operands = 0 : i64, tpu.core_type = #tpu.core_type<tc>} {
    %c0 = arith.constant 0 : index
    %c0_0 = arith.constant 0 : index
    %0 = vector.load %arg0[%c0, %c0_0] : memref<8x2xf32, #tpu.memory_space<vmem>>, vector<8x2xf32>
    %c0_1 = arith.constant 0 : index
    %c0_2 = arith.constant 0 : index
    %1 = vector.load %arg1[%c0_1, %c0_2] : memref<2x10xf32, #tpu.memory_space<vmem>>, vector<2x10xf32>
    %2 = vector.extract_strided_slice %0 {offsets = [0, 0], sizes = [8, 1], strides = [1, 1]} : vector<8x2xf32> to vector<8x1xf32>
    %3 = vector.extract_strided_slice %0 {offsets = [0, 1], sizes = [8, 1], strides = [1, 1]} : vector<8x2xf32> to vector<8x1xf32>
    %4 = vector.extract_strided_slice %1 {offsets = [0, 0], sizes = [1, 10], strides = [1, 1]} : vector<2x10xf32> to vector<1x10xf32>
    %5 = vector.extract_strided_slice %1 {offsets = [1, 0], sizes = [1, 10], strides = [1, 1]} : vector<2x10xf32> to vector<1x10xf32>
    %6 = vector.broadcast %2 : vector<8x1xf32> to vector<8x10xf32>
    %7 = vector.broadcast %4 : vector<1x10xf32> to vector<8x10xf32>
    %8 = arith.mulf %6, %7 : vector<8x10xf32>
    %9 = vector.broadcast %3 : vector<8x1xf32> to vector<8x10xf32>
    %10 = vector.broadcast %5 : vector<1x10xf32> to vector<8x10xf32>
    %11 = arith.mulf %9, %10 : vector<8x10xf32>
    %12 = arith.addf %8, %11 : vector<8x10xf32>
    %13 = arith.mulf %2, %2 : vector<8x1xf32>
    %14 = arith.mulf %3, %3 : vector<8x1xf32>
    %15 = arith.addf %13, %14 : vector<8x1xf32>
    %16 = math.rsqrt %15 : vector<8x1xf32>
    %17 = arith.mulf %15, %16 : vector<8x1xf32>
    %18 = vector.broadcast %16 : vector<8x1xf32> to vector<8x10xf32>
    %19 = arith.mulf %12, %18 : vector<8x10xf32>
    %cst = arith.constant -1.000000e+00 : f32
    %cst_3 = arith.constant 1.000000e+00 : f32
    %20 = vector.broadcast %cst : f32 to vector<8x10xf32>
    %21 = arith.maximumf %20, %19 : vector<8x10xf32>
    %22 = vector.broadcast %cst_3 : f32 to vector<8x10xf32>
    %23 = arith.minimumf %22, %21 : vector<8x10xf32>
    %24 = arith.mulf %23, %23 : vector<8x10xf32>
    %cst_4 = arith.constant 8.000000e+00 : f32
    %25 = vector.broadcast %cst_4 : f32 to vector<8x10xf32>
    %26 = arith.mulf %25, %24 : vector<8x10xf32>
    %27 = arith.mulf %26, %24 : vector<8x10xf32>
    %cst_5 = arith.constant 8.000000e+00 : f32
    %28 = vector.broadcast %cst_5 : f32 to vector<8x10xf32>
    %29 = arith.mulf %28, %24 : vector<8x10xf32>
    %30 = arith.subf %27, %29 : vector<8x10xf32>
    %cst_6 = arith.constant 1.000000e+00 : f32
    %31 = vector.broadcast %cst_6 : f32 to vector<8x10xf32>
    %32 = arith.addf %30, %31 : vector<8x10xf32>
    %cst_7 = arith.constant 0.707106769 : f32
    %33 = vector.broadcast %cst_7 : f32 to vector<8x10xf32>
    %34 = arith.cmpf ole, %23, %33 : vector<8x10xf32>
    %35 = arith.extui %34 : vector<8x10xi1> to vector<8x10xi32>
    %cst_8 = arith.constant 2.6794897E-8 : f32
    %36 = vector.broadcast %cst_8 : f32 to vector<8x10xf32>
    %37 = arith.cmpf ole, %23, %36 : vector<8x10xf32>
    %38 = arith.extui %37 : vector<8x10xi1> to vector<8x10xi32>
    %39 = arith.addi %35, %38 : vector<8x10xi32>
    %cst_9 = arith.constant -0.707106769 : f32
    %40 = vector.broadcast %cst_9 : f32 to vector<8x10xf32>
    %41 = arith.cmpf ole, %23, %40 : vector<8x10xf32>
    %42 = arith.extui %41 : vector<8x10xi1> to vector<8x10xi32>
    %43 = arith.addi %39, %42 : vector<8x10xi32>
    %cst_10 = arith.constant -1.000000e+00 : f32
    %44 = vector.broadcast %cst_10 : f32 to vector<8x10xf32>
    %45 = arith.cmpf ole, %23, %44 : vector<8x10xf32>
    %46 = arith.extui %45 : vector<8x10xi1> to vector<8x10xi32>
    %47 = arith.addi %43, %46 : vector<8x10xi32>
    %c1_i32 = arith.constant 1 : i32
    %48 = vector.broadcast %c1_i32 : i32 to vector<8x10xi32>
    %49 = arith.andi %47, %48 : vector<8x10xi32>
    %c2_i32 = arith.constant 2 : i32
    %50 = vector.broadcast %c2_i32 : i32 to vector<8x10xi32>
    %51 = arith.muli %50, %49 : vector<8x10xi32>
    %c1_i32_11 = arith.constant 1 : i32
    %52 = vector.broadcast %c1_i32_11 : i32 to vector<8x10xi32>
    %53 = arith.subi %52, %51 : vector<8x10xi32>
    %54 = arith.sitofp %53 : vector<8x10xi32> to vector<8x10xf32>
    %55 = arith.mulf %54, %32 : vector<8x10xf32>
    %56 = arith.sitofp %47 : vector<8x10xi32> to vector<8x10xf32>
    %cst_12 = arith.constant 2.000000e+00 : f32
    %57 = vector.broadcast %cst_12 : f32 to vector<8x10xf32>
    %58 = arith.mulf %57, %56 : vector<8x10xf32>
    %59 = arith.subf %55, %58 : vector<8x10xf32>
    %cst_13 = arith.constant 0.000000e+00 : f32
    %60 = vector.broadcast %cst_13 : f32 to vector<8x1xf32>
    %61 = arith.subf %60, %17 : vector<8x1xf32>
    %62 = vector.broadcast %61 : vector<8x1xf32> to vector<8x10xf32>
    %63 = arith.maximumf %62, %12 : vector<8x10xf32>
    %64 = vector.broadcast %17 : vector<8x1xf32> to vector<8x10xf32>
    %65 = arith.minimumf %64, %63 : vector<8x10xf32>
    %c0_14 = arith.constant 0 : index
    %c0_15 = arith.constant 0 : index
    %66 = vector.load %arg2[%c0_14, %c0_15] : memref<8x10xf32, #tpu.memory_space<vmem>>, vector<8x10xf32>
    tpu.vector_store %arg2[%c0_14, %c0_15], %65 {strides = array<i32>} : memref<8x10xf32, #tpu.memory_space<vmem>>, vector<8x10xf32>,
    %67 = vector.broadcast %17 : vector<8x1xf32> to vector<8x10xf32>
    %68 = arith.mulf %59, %67 : vector<8x10xf32>
    %c0_16 = arith.constant 0 : index
    %c0_17 = arith.constant 0 : index
    %69 = vector.load %arg3[%c0_16, %c0_17] : memref<8x10xf32, #tpu.memory_space<vmem>>, vector<8x10xf32>
    tpu.vector_store %arg3[%c0_16, %c0_17], %68 {strides = array<i32>} : memref<8x10xf32, #tpu.memory_space<vmem>>, vector<8x10xf32>,
    return
  }
}

</mosaic_0001>

<llo_original>
// kernel: angle_linear.1
$region0: #{angle_linear.1}
  #allocation0 [shape = 'u32[]', space=smem, size = 0x4, offset = 0x4, fixed_abs, tag = 'smem constant byte address 0x4 - core index']
  #allocation1 [shape = 'u32[144,128]{1,0:T(1,128)}', space=vmem, size = 0x12000, scoped, tag = 'internal scratch']
  %s0 = inlined_call_operand.vmem [shape: f32[8,2], index: 0, kind: input, shape index: {}]
  %s1 = inlined_call_operand.vmem [shape: f32[2,10], index: 1, kind: input, shape index: {}]
  %s2 = inlined_call_operand.hbm [shape: f32[8,10], index: 2, kind: output, shape index: {0}]
  %s3 = inlined_call_operand.hbm [shape: f32[8,10], index: 3, kind: output, shape index: {1}]
  %4 = xla_tuple %s2, %s3
  %s5 = sld [smem:[#allocation0]]
  $region26: #{angle_linear.1} parent=0
    _
  %s7 = ssub.s32 1, %s5
  %s8 = scalar_select 0, %s7, %s5
  $region1: #{angle_linear.1} parent=0
    #allocation2 [shape = 'u8[4096]{0}', space=vmem, size = 0x1000, scoped, tag = 'output window, operand 0, single buffered']
    #allocation3 [shape = 's32[1]{0}', space=sflag, size = 0x4, scoped, tag = 'scoped memory for angle_linear.1']
    #allocation4 [shape = 'u8[4096]{0}', space=vmem, size = 0x1000, scoped, tag = 'output window, operand 1, single buffered']
    #allocation5 [shape = 's32[1]{0}', space=sflag, size = 0x4, scoped, tag = 'scoped memory for angle_linear.1']
    %9 = vsyncpa [#allocation3], 0
    %10 = vsyncpa [#allocation5], 0
    // Predicated region
    $region2: #{angle_linear.1} parent=1 // pred_check
      _
    $region3: #{angle_linear.1} parent=1 // pred_check_branch
      %12 = sbr.rel (0) target = $region5
    $region4: #{angle_linear.1} parent=1 // pred_region
      _
    $region5: #{angle_linear.1} parent=1 // pred_fallthru
      _
    // Predicated region
    $region6: #{angle_linear.1} parent=1 // pred_check
      _
    $region7: #{angle_linear.1} parent=1 // pred_check_branch
      %14 = sbr.rel (0) target = $region9
    $region8: #{angle_linear.1} parent=1 // pred_region
      _
    $region9: #{angle_linear.1} parent=1 // pred_fallthru
      _
    %v15 = vld [vmem:[%s0] sm:$0xff]
    %v16 = vld [vmem:[%s1] sm:$0x3]
    %18 = vset.pattern.permute.xlu0 0
    %19 = vperm.xlu0 %18, %v15
    %v20 = vpop.permute.xlu0 %19
    %v22 = vlaneseq
    %v23 = vshrl.u32 %v22, 7
    %v24 = vsub.s32 0, %v23
    %v25 = vrot.slane %v16, %v24
    %v26 = vmul.f32 %v20, %v25
    %27 = vset.pattern.permute.xlu0 1
    %28 = vperm.xlu0 %27, %v15
    %v29 = vpop.permute.xlu0 %28
    %v31 = vlaneseq
    %v32 = vshrl.u32 %v31, 7
    %v33 = vsub.s32 1, %v32
    %v34 = vrot.slane %v16, %v33
    %v35 = vmul.f32 %v29, %v34
    %v36 = vadd.f32 %v26, %v35
    %v37 = vmul.f32 %v15, %v15
    %39 = vrot.lane.b32.xlu0 %v37, 127
    %v40 = vpop.permute.xlu0 %39
    %v42 = vadd.f32 %v37, %v40
    %v43 = vrsqrt.pop %v42
    %v44 = vmul.f32 %v42, %v43
    %46 = vset.pattern.permute.xlu0 0
    %47 = vperm.xlu0 %46, %v43
    %v48 = vpop.permute.xlu0 %47
    %v50 = vmul.f32 %v36, %v48
    %v51 = vmax.f32 %v50, -1.0
    %v52 = vmin.f32 %v51, 1.0
    %v53 = vmul.f32 %v52, %v52
    %v54 = vmul.f32 %v53, 8.0
    %v55 = vmul.f32 %v54, %v53
    %v56 = vsub.f32 %v55, %v54
    %v57 = vadd.f32 %v56, 1.0
    %vm58 = vcmp.le.f32.partialorder %v52, 0.70710677
    %v59 = vsel %vm58, 1, 0
    %vm60 = vcmp.le.f32.partialorder %v52, 2.6794897e-08
    %v61 = vsel %vm60, 1, 0
    %v62 = vadd.s32 %v59, %v61
    %vm63 = vcmp.le.f32.partialorder %v52, -0.70710677
    %v64 = vsel %vm63, 1, 0
    %v65 = vadd.s32 %v62, %v64
    %vm66 = vcmp.le.f32.partialorder %v52, -1.0
    %v67 = vsel %vm66, 1, 0
    %v68 = vadd.s32 %v65, %v67
    %v69 = vand.u32 %v68, 1
    %v70 = vmul.u32 %v69, 2
    %v71 = vsub.s32 1, %v70
    %v72 = vcvt.s32.f32 %v71
    %v73 = vmul.f32 %v72, %v57
    %v74 = vcvt.s32.f32 %v68
    %v75 = vmul.f32 %v74, 2.0
    %v76 = vsub.f32 %v73, %v75
    %v77 = vsub.f32 0.0, %v44
    %79 = vset.pattern.permute.xlu0 0
    %80 = vperm.xlu0 %79, %v77
    %v81 = vpop.permute.xlu0 %80
    %v83 = vmax.f32 %v81, %v36
    %85 = vset.pattern.permute.xlu0 0
    %86 = vperm.xlu0 %85, %v44
    %v87 = vpop.permute.xlu0 %86
    %v89 = vmin.f32 %v87, %v83
    %vm90 = vcmask 80896
    %91 = vst.msk [vmem:[#allocation2] sm:$0xff] %vm90, %v89
    %v92 = vmul.f32 %v76, %v87
    %93 = vst.msk [vmem:[#allocation4] sm:$0xff] %vm90, %v92
    // Predicated region
    $region10: #{angle_linear.1} parent=1 // pred_check
      _
    $region11: #{angle_linear.1} parent=1 // pred_check_branch
      %95 = sbr.rel (0) target = $region13
    $region12: #{angle_linear.1} parent=1 // pred_region
      %s97 = ssub.s32 128, 128
      %98 = vsyncadd [#allocation3], %s97
      %s100 = sshll.u32 [#allocation2], 4
      %s101 = int_to_ptr.vmem [resolvable:$true] %s100
      %103 = dma.vmem_to_hbm [thread:$0]  %s101, 128, %s2, [#allocation3]
    $region13: #{angle_linear.1} parent=1 // pred_fallthru
      _
    // Predicated region
    $region14: #{angle_linear.1} parent=1 // pred_check
      _
    $region15: #{angle_linear.1} parent=1 // pred_check_branch
      %105 = sbr.rel (0) target = $region17
    $region16: #{angle_linear.1} parent=1 // pred_region
      %s107 = ssub.s32 128, 128
      %108 = vsyncadd [#allocation5], %s107
      %s110 = sshll.u32 [#allocation4], 4
      %s111 = int_to_ptr.vmem [resolvable:$true] %s110
      %113 = dma.vmem_to_hbm [thread:$0]  %s111, 128, %s3, [#allocation5]
    $region17: #{angle_linear.1} parent=1 // pred_fallthru
      _
    // Predicated region
    $region18: #{angle_linear.1} parent=1 // pred_check
      _
    $region19: #{angle_linear.1} parent=1 // pred_check_branch
      %115 = sbr.rel (0) target = $region21
    $region20: #{angle_linear.1} parent=1 // pred_region
      %116 = dma.done [#allocation3], 128
    $region21: #{angle_linear.1} parent=1 // pred_fallthru
      _
    // Predicated region
    $region22: #{angle_linear.1} parent=1 // pred_check
      _
    $region23: #{angle_linear.1} parent=1 // pred_check_branch
      %118 = sbr.rel (0) target = $region25
    $region24: #{angle_linear.1} parent=1 // pred_region
      %119 = dma.done [#allocation5], 128
    $region25: #{angle_linear.1} parent=1 // pred_fallthru
      _
    %120 = vsyncpa [#allocation3], 1
    %121 = vsyncpa [#allocation5], 1

</llo_original>
